<compile_context>
chip_gen: v7x
topology: tpu7x:2x2x1
jax: 0.10.0
libtpu: 0.0.40
codegen_flags: <defaults>
</compile_context>

<pallas_src>
import functools

import jax
import jax.numpy as jnp
from jax.experimental import pallas as pl
from jax.experimental.pallas import tpu as pltpu


def _round_up(x, m):
    return ((x + m - 1) // m) * m


def _pick_tile_128(dim_padded, max_tile=512):
    """Largest multiple of 128 <= max_tile that divides dim_padded."""
    for t in range(min(max_tile, dim_padded), 127, -128):
        if dim_padded % t == 0:
            return t
    return 128


def _dense_kernel(x_ref, *rest, drop_rate, training):
    """One grid step: (tm, tk) x-tile  x  (tk, tn) W-tile  ->  (tm, tn) acc."""
    if training and drop_rate > 0.0:
        rand_ref, w_ref, b_ref, o_ref, acc_ref = rest
    else:
        rand_ref = None
        w_ref, b_ref, o_ref, acc_ref = rest

    k = pl.program_id(2)

    @pl.when(k == 0)
    def _init():
        acc_ref[...] = jnp.zeros_like(acc_ref)

    x = x_ref[...].astype(jnp.float32)

    if training and drop_rate > 0.0:
        if drop_rate >= 1.0:
            # Everything is dropped; scale is undefined -> output of dropout is 0.
            x = jnp.zeros_like(x)
        else:
            keep = rand_ref[...] >= jnp.float32(drop_rate)
            scale = jnp.float32(1.0 / (1.0 - drop_rate))
            x = jnp.where(keep, x * scale, jnp.zeros_like(x))
    # eval mode: dropout is the identity.

    # tanh in f32 (EUP), bf16 operands for the MXU fast path, f32 accumulation.
    h = jnp.tanh(x).astype(jnp.bfloat16)
    acc_ref[...] += jnp.dot(h, w_ref[...], preferred_element_type=jnp.float32)

    @pl.when(k == pl.num_programs(2) - 1)
    def _finalize():
        o_ref[...] = (acc_ref[...] + b_ref[...].astype(jnp.float32)).astype(o_ref.dtype)


def dense_layer(x, weight, bias, *, drop_rate=0.1, training=False, rng_key=None,
                tm_max=512, tn_max=512, tk_max=512):
    """x: (M, input_dim); weight: (input_dim, output_dim); bias: (output_dim,).

    `weight` is the transpose of PyTorch's nn.Linear.weight (out, in), so the
    kernel computes  out = tanh(dropout(x)) @ W + b.
    """
    M, K = x.shape
    N = weight.shape[1]

    # Lane-dense padding: K, N up to multiples of 128; M up to a multiple of tm.
    K_pad = _round_up(K, 128)
    N_pad = _round_up(N, 128)
    tk = _pick_tile_128(K_pad, tk_max)
    tn = _pick_tile_128(N_pad, tn_max)
    tm = min(tm_max, _round_up(M, 8))          # multiple of 8, up to tm_max
    M_pad = _round_up(M, tm)

    x_p = jnp.pad(x, ((0, M_pad - M), (0, K_pad - K)))
    w_p = jnp.pad(weight, ((0, K_pad - K), (0, N_pad - N))).astype(jnp.bfloat16)
    b_p = jnp.pad(bias, (0, N_pad - N)).reshape(1, N_pad).astype(jnp.float32)

    use_dropout = bool(training) and float(drop_rate) > 0.0

    grid = (M_pad // tm, N_pad // tn, K_pad // tk)

    in_specs = [pl.BlockSpec((tm, tk), lambda i, j, k: (i, k))]     # x row/K tile
    inputs = [x_p]
    if use_dropout:
        if rng_key is None:
            rng_key = jax.random.PRNGKey(0)
        rand = jax.random.uniform(rng_key, (M_pad, K_pad), dtype=jnp.float32)
        in_specs.append(pl.BlockSpec((tm, tk), lambda i, j, k: (i, k)))  # dropout rand
        inputs.append(rand)
    in_specs += [
        pl.BlockSpec((tk, tn), lambda i, j, k: (k, j)),             # W tile (bf16)
        pl.BlockSpec((1, tn), lambda i, j, k: (0, j)),              # bias tile
    ]
    inputs += [w_p, b_p]

    kernel = functools.partial(
        _dense_kernel, drop_rate=float(drop_rate), training=bool(training)
    )

    grid_spec = pltpu.PrefetchScalarGridSpec(
        num_scalar_prefetch=0,
        grid=grid,
        in_specs=in_specs,
        out_specs=pl.BlockSpec((tm, tn), lambda i, j, k: (i, j)),
        scratch_shapes=[pltpu.VMEM((tm, tn), jnp.float32)],
    )

    out_p = pl.pallas_call(
        kernel,
        out_shape=jax.ShapeDtypeStruct((M_pad, N_pad), x.dtype),
        grid_spec=grid_spec,
        compiler_params=pltpu.CompilerParams(
            dimension_semantics=("parallel", "parallel", "arbitrary"),
        ),
    )(*inputs)

    return out_p[:M, :N]


if __name__ == "__main__":
    # Small logical shapes implied by the forward: x: (batch, seq, input_dim),
    # Linear(input_dim -> output_dim) on the last dim.  The wrapper pads to
    # lane-dense tiles internally.
    batch, seq, input_dim, output_dim = 2, 8, 32, 16
    drop_rate = 0.1

    key = jax.random.PRNGKey(0)
    kx, kw, kb, kd = jax.random.split(key, 4)

    x = jax.random.normal(kx, (batch, seq, input_dim), dtype=jnp.float32)

    # Deterministic nn.Linear-style init: U(-1/sqrt(in), 1/sqrt(in)).
    # PyTorch stores weight as (out, in); we keep the transposed (in, out) layout.
    bound = 1.0 / (input_dim ** 0.5)
    weight = jax.random.uniform(kw, (input_dim, output_dim), jnp.float32, -bound, bound)
    bias = jax.random.uniform(kb, (output_dim,), jnp.float32, -bound, bound)

    # Flatten leading dims (Linear acts on the last axis), run the kernel (eval mode).
    x2d = x.reshape(batch * seq, input_dim)
    out2d = dense_layer(x2d, weight, bias, drop_rate=drop_rate, training=False)
    out = out2d.reshape(batch, seq, output_dim)
    jax.block_until_ready(out)

    # Reference (eval mode: dropout = identity), bf16-matched matmul operands.
    h_ref = jnp.tanh(x2d).astype(jnp.bfloat16).astype(jnp.float32)
    w_ref = weight.astype(jnp.bfloat16).astype(jnp.float32)
    ref = (h_ref @ w_ref + bias).reshape(batch, seq, output_dim)
    assert out.shape == (batch, seq, output_dim)
    assert jnp.allclose(out, ref, atol=2e-3, rtol=2e-3)

    # Exercise the training (dropout) path once; randoms are fed from the host.
    out_train = dense_layer(
        x2d, weight, bias, drop_rate=drop_rate, training=True, rng_key=kd
    )
    jax.block_until_ready(out_train)
    assert bool(jnp.all(jnp.isfinite(out_train)))

    print("KERNEL_OK")
</pallas_src>

<mosaic_0001>
module attributes {stable_mosaic.version = 11 : i64} {
  func.func @_dense_kernel(%arg0: i32, %arg1: i32, %arg2: i32, %arg3: memref<16x128xf32, #tpu.memory_space<vmem>>, %arg4: memref<128x128xbf16, #tpu.memory_space<vmem>>, %arg5: memref<1x128xf32, #tpu.memory_space<vmem>>, %arg6: memref<16x128xf32, #tpu.memory_space<vmem>>, %arg7: memref<16x128xf32, #tpu.memory_space<vmem>>) attributes {dimension_semantics = [#tpu.dimension_semantics<parallel>, #tpu.dimension_semantics<parallel>, #tpu.dimension_semantics<arbitrary>], iteration_bounds = array<i64: 1, 1, 1>, scalar_prefetch = 0 : i64, scratch_operands = 1 : i64, tpu.core_type = #tpu.core_type<tc>, window_params = [{transform_indices = @transform_0, window_bounds = array<i64: 16, 128>}, {transform_indices = @transform_1, window_bounds = array<i64: 128, 128>}, {transform_indices = @transform_2, window_bounds = array<i64: 1, 128>}, {transform_indices = @transform_3, window_bounds = array<i64: 16, 128>}]} {
    %c0_i32 = arith.constant 0 : i32
    %0 = arith.cmpi eq, %arg2, %c0_i32 : i32
    %1 = arith.extui %0 : i1 to i32
    %c0_i32_0 = arith.constant 0 : i32
    %2 = arith.cmpi ne, %1, %c0_i32_0 : i32
    scf.if %2 {
      %cst_10 = arith.constant 0.000000e+00 : f32
      %14 = vector.broadcast %cst_10 : f32 to vector<16x128xf32>
      %c0_11 = arith.constant 0 : index
      %c0_12 = arith.constant 0 : index
      %15 = vector.load %arg7[%c0_11, %c0_12] : memref<16x128xf32, #tpu.memory_space<vmem>>, vector<16x128xf32>
      tpu.vector_store %arg7[%c0_11, %c0_12], %14 {strides = array<i32>} : memref<16x128xf32, #tpu.memory_space<vmem>>, vector<16x128xf32>,
    } else {
    }
    %c0 = arith.constant 0 : index
    %c0_1 = arith.constant 0 : index
    %3 = vector.load %arg3[%c0, %c0_1] : memref<16x128xf32, #tpu.memory_space<vmem>>, vector<16x128xf32>
    %4 = math.tanh %3 : vector<16x128xf32>
    %5 = arith.truncf %4 : vector<16x128xf32> to vector<16x128xbf16>
    %c0_2 = arith.constant 0 : index
    %c0_3 = arith.constant 0 : index
    %6 = vector.load %arg7[%c0_2, %c0_3] : memref<16x128xf32, #tpu.memory_space<vmem>>, vector<16x128xf32>
    %c0_4 = arith.constant 0 : index
    %c0_5 = arith.constant 0 : index
    %7 = vector.load %arg4[%c0_4, %c0_5] : memref<128x128xbf16, #tpu.memory_space<vmem>>, vector<128x128xbf16>
    %cst = arith.constant dense<0.000000e+00> : vector<16x128xf32>
    %8 = tpu.matmul %5, %7, %cst {dimension_numbers = #tpu.dot_dimension_numbers<[1], [0], [0], [1], [0, 0, 1, 1], [], []>} : vector<16x128xbf16>, vector<128x128xbf16>, vector<16x128xf32> -> vector<16x128xf32>
    %9 = arith.addf %6, %8 : vector<16x128xf32>
    %c0_6 = arith.constant 0 : index
    %c0_7 = arith.constant 0 : index
    %10 = vector.load %arg7[%c0_6, %c0_7] : memref<16x128xf32, #tpu.memory_space<vmem>>, vector<16x128xf32>
    tpu.vector_store %arg7[%c0_6, %c0_7], %9 {strides = array<i32>} : memref<16x128xf32, #tpu.memory_space<vmem>>, vector<16x128xf32>,
    %c0_i32_8 = arith.constant 0 : i32
    %11 = arith.cmpi eq, %arg2, %c0_i32_8 : i32
    %12 = arith.extui %11 : i1 to i32
    %c0_i32_9 = arith.constant 0 : i32
    %13 = arith.cmpi ne, %12, %c0_i32_9 : i32
    scf.if %13 {
      %c0_10 = arith.constant 0 : index
      %c0_11 = arith.constant 0 : index
      %14 = vector.load %arg7[%c0_10, %c0_11] : memref<16x128xf32, #tpu.memory_space<vmem>>, vector<16x128xf32>
      %c0_12 = arith.constant 0 : index
      %c0_13 = arith.constant 0 : index
      %15 = vector.load %arg5[%c0_12, %c0_13] : memref<1x128xf32, #tpu.memory_space<vmem>>, vector<1x128xf32>
      %16 = vector.broadcast %15 : vector<1x128xf32> to vector<16x128xf32>
      %17 = arith.addf %14, %16 : vector<16x128xf32>
      %c0_14 = arith.constant 0 : index
      %c0_15 = arith.constant 0 : index
      %18 = vector.load %arg6[%c0_14, %c0_15] : memref<16x128xf32, #tpu.memory_space<vmem>>, vector<16x128xf32>
      tpu.vector_store %arg6[%c0_14, %c0_15], %17 {strides = array<i32>} : memref<16x128xf32, #tpu.memory_space<vmem>>, vector<16x128xf32>,
    } else {
    }
    return
  }
  func.func @transform_0(%arg0: i32, %arg1: i32, %arg2: i32) -> (i32, i32) {
    %c0_i32 = arith.constant 0 : i32
    return %arg0, %arg2 : i32, i32
  }
  func.func @transform_1(%arg0: i32, %arg1: i32, %arg2: i32) -> (i32, i32) {
    %c0_i32 = arith.constant 0 : i32
    return %arg2, %arg1 : i32, i32
  }
  func.func @transform_2(%arg0: i32, %arg1: i32, %arg2: i32) -> (i32, i32) {
    %c0_i32 = arith.constant 0 : i32
    %c0_i32_0 = arith.constant 0 : i32
    return %c0_i32, %arg1 : i32, i32
  }
  func.func @transform_3(%arg0: i32, %arg1: i32, %arg2: i32) -> (i32, i32) {
    %c0_i32 = arith.constant 0 : i32
    return %arg0, %arg1 : i32, i32
  }
}

</mosaic_0001>

<llo_original>
// kernel: tpu_custom_call.1
$region0: #{tpu_custom_call.1}
  #allocation0 [shape = 'u32[]', space=smem, size = 0x4, offset = 0x4, fixed_abs, tag = 'smem constant byte address 0x4 - core index']
  #allocation1 [shape = 'u32[144,128]{1,0:T(1,128)}', space=vmem, size = 0x12000, scoped, tag = 'internal scratch']
  #allocation2 [shape = 'f32[16,128]{1,0:T(8,128)}', space=vmem, size = 0x2000, scoped, tag = 'scratch operand']
  %s0 = inlined_call_operand.hbm [shape: f32[16,128], index: 0, kind: input, shape index: {}]
  %s1 = inlined_call_operand.hbm [shape: bf16[128,128], index: 1, kind: input, shape index: {}]
  %s2 = inlined_call_operand.vmem [shape: f32[1,128], index: 2, kind: input, shape index: {}]
  %s3 = inlined_call_operand.hbm [shape: f32[16,128], index: 3, kind: output, shape index: {}]
  %s4 = sld [smem:[#allocation0]]
  $region38: #{tpu_custom_call.1} parent=0
    _
  %s6 = ssub.s32 1, %s4
  %s7 = scalar_select 0, %s6, %s4
  $region1: #{tpu_custom_call.1} parent=0
    #allocation3 [shape = 'u8[8192]{0}', space=vmem, size = 0x2000, scoped, tag = 'input window, operand 0, single buffered']
    #allocation4 [shape = 's32[1]{0}', space=sflag, size = 0x4, scoped, tag = 'scoped memory for tpu_custom_call.1']
    #allocation5 [shape = 's32[1]{0}', space=sflag, size = 0x4, scoped, tag = 'scoped memory for tpu_custom_call.1']
    #allocation6 [shape = 'u8[32768]{0}', space=vmem, size = 0x8000, scoped, tag = 'input window, operand 1, single buffered']
    #allocation7 [shape = 's32[1]{0}', space=sflag, size = 0x4, scoped, tag = 'scoped memory for tpu_custom_call.1']
    #allocation8 [shape = 'u8[8192]{0}', space=vmem, size = 0x2000, scoped, tag = 'output window, operand 0, single buffered']
    %8 = vsyncpa [#allocation4], 0
    %9 = vsyncpa [#allocation7], 0
    %10 = vsyncpa [#allocation5], 0
    // Predicated region
    $region2: #{tpu_custom_call.1} parent=1 // pred_check
      _
    $region3: #{tpu_custom_call.1} parent=1 // pred_check_branch
      %12 = sbr.rel (0) target = $region5
    $region4: #{tpu_custom_call.1} parent=1 // pred_region
      %s14 = ssub.s32 256, 256
      %15 = vsyncadd [#allocation4], %s14
      %s16 = sshll.u32 [#allocation3], 4
      %s17 = int_to_ptr.vmem [resolvable:$true] %s16
      %22 = dma.hbm_to_vmem [thread:$0]  %s0, 256, %s17, [#allocation4], 128, 128, 8
    $region5: #{tpu_custom_call.1} parent=1 // pred_fallthru
      _
    // Predicated region
    $region6: #{tpu_custom_call.1} parent=1 // pred_check
      _
    $region7: #{tpu_custom_call.1} parent=1 // pred_check_branch
      %24 = sbr.rel (0) target = $region9
    $region8: #{tpu_custom_call.1} parent=1 // pred_region
      %s26 = ssub.s32 1024, 1024
      %27 = vsyncadd [#allocation7], %s26
      %s28 = sshll.u32 [#allocation6], 4
      %s29 = int_to_ptr.vmem [resolvable:$true] %s28
      %34 = dma.hbm_to_vmem [thread:$0]  %s1, 1024, %s29, [#allocation7], 64, 64, 4
    $region9: #{tpu_custom_call.1} parent=1 // pred_fallthru
      _
    // Predicated region
    $region10: #{tpu_custom_call.1} parent=1 // pred_check
      _
    $region11: #{tpu_custom_call.1} parent=1 // pred_check_branch
      %36 = sbr.rel (0) target = $region13
    $region12: #{tpu_custom_call.1} parent=1 // pred_region
      _
    $region13: #{tpu_custom_call.1} parent=1 // pred_fallthru
      _
    // Predicated region
    $region14: #{tpu_custom_call.1} parent=1 // pred_check
      _
    $region15: #{tpu_custom_call.1} parent=1 // pred_check_branch
      %38 = sbr.rel (0) target = $region17
    $region16: #{tpu_custom_call.1} parent=1 // pred_region
      %39 = dma.done [#allocation4], 256
    $region17: #{tpu_custom_call.1} parent=1 // pred_fallthru
      _
    // Predicated region
    $region18: #{tpu_custom_call.1} parent=1 // pred_check
      _
    $region19: #{tpu_custom_call.1} parent=1 // pred_check_branch
      %41 = sbr.rel (0) target = $region21
    $region20: #{tpu_custom_call.1} parent=1 // pred_region
      %42 = dma.done [#allocation7], 1024
    $region21: #{tpu_custom_call.1} parent=1 // pred_fallthru
      _
    %p44 = scmp.eq.s32.totalorder 0, 0
    // Predicated region
    $region22: #{tpu_custom_call.1} parent=1 // pred_check
      %p45 = pneg %p44
    $region23: #{tpu_custom_call.1} parent=1 // pred_check_branch
      %47 = sbr.rel (%p45) target = $region25
    $region24: #{tpu_custom_call.1} parent=1 // pred_region
      %48 = vst [vmem:[#allocation2] sm:$0xff] 0.0
      %49 = vst [vmem:[#allocation2 + $0x8] sm:$0xff] 0.0
    $region25: #{tpu_custom_call.1} parent=1 // pred_fallthru
      _
    %v50 = vld [vmem:[#allocation3] sm:$0xff]
    %v51 = vld [vmem:[#allocation3 + $0x8] sm:$0xff]
    %v52 = vtanh.pop %v50
    %v53 = vtanh.pop %v51
    %v54 = vpack.c.bf16 %v53, %v52
    %v55 = vld [vmem:[#allocation2] sm:$0xff]
    %v56 = vld [vmem:[#allocation2 + $0x8] sm:$0xff]
    %v57 = vld [vmem:[#allocation6] sm:$0xf]
    %v58 = vld [vmem:[#allocation6 + $0x4] sm:$0xf]
    %v59 = vld [vmem:[#allocation6 + $0x8] sm:$0xf]
    %v60 = vld [vmem:[#allocation6 + $0xc] sm:$0xf]
    %v61 = vld [vmem:[#allocation6 + $0x10] sm:$0xf]
    %v62 = vld [vmem:[#allocation6 + $0x14] sm:$0xf]
    %v63 = vld [vmem:[#allocation6 + $0x18] sm:$0xf]
    %v64 = vld [vmem:[#allocation6 + $0x1c] sm:$0xf]
    %v65 = vld [vmem:[#allocation6 + $0x20] sm:$0xf]
    %v66 = vld [vmem:[#allocation6 + $0x24] sm:$0xf]
    %v67 = vld [vmem:[#allocation6 + $0x28] sm:$0xf]
    %v68 = vld [vmem:[#allocation6 + $0x2c] sm:$0xf]
    %v69 = vld [vmem:[#allocation6 + $0x30] sm:$0xf]
    %v70 = vld [vmem:[#allocation6 + $0x34] sm:$0xf]
    %v71 = vld [vmem:[#allocation6 + $0x38] sm:$0xf]
    %v72 = vld [vmem:[#allocation6 + $0x3c] sm:$0xf]
    %v89 = vunpack.c.l.b16 %v57
    %v90 = vunpack.c.l.b16 %v58
    %v91 = vunpack.c.l.b16 %v59
    %v92 = vunpack.c.l.b16 %v60
    %v93 = vunpack.c.l.b16 %v61
    %v94 = vunpack.c.l.b16 %v62
    %v95 = vunpack.c.l.b16 %v63
    %v96 = vunpack.c.l.b16 %v64
    %v97 = vunpack.c.l.b16 %v65
    %v98 = vunpack.c.l.b16 %v66
    %v99 = vunpack.c.l.b16 %v67
    %v100 = vunpack.c.l.b16 %v68
    %v101 = vunpack.c.l.b16 %v69
    %v102 = vunpack.c.l.b16 %v70
    %v103 = vunpack.c.l.b16 %v71
    %v104 = vunpack.c.l.b16 %v72
    %v105 = vpack.c.b16 %v90, %v89
    %v106 = vpack.c.b16 %v92, %v91
    %v107 = vpack.c.b16 %v94, %v93
    %v108 = vpack.c.b16 %v96, %v95
    %v109 = vpack.c.b16 %v98, %v97
    %v110 = vpack.c.b16 %v100, %v99
    %v111 = vpack.c.b16 %v102, %v101
    %v112 = vpack.c.b16 %v104, %v103
    %121 = vmatprep.subr.bf16.mxu0 0
    %122 = vmatpush1.bf16.msra.mxu0 %v105
    %123 = vmatprep.subr.bf16.mxu0 0
    %124 = vmatpush1.bf16.msra.mxu0 %v106
    %125 = vmatprep.subr.bf16.mxu0 0
    %126 = vmatpush1.bf16.msra.mxu0 %v107
    %127 = vmatprep.subr.bf16.mxu0 0
    %128 = vmatpush1.bf16.msra.mxu0 %v108
    %129 = vmatprep.subr.bf16.mxu0 0
    %130 = vmatpush1.bf16.msra.mxu0 %v109
    %131 = vmatprep.subr.bf16.mxu0 0
    %132 = vmatpush1.bf16.msra.mxu0 %v110
    %133 = vmatprep.subr.bf16.mxu0 0
    %134 = vmatpush1.bf16.msra.mxu0 %v111
    %135 = vmatprep.subr.bf16.mxu0 0
    %136 = vmatpush1.bf16.msra.mxu0 %v112
    %137 = vmatprep.subr.bf16.mxu0 0
    %138 = vmatpush1.bf16.msra.mxu0 0
    %139 = vmatprep.subr.bf16.mxu0 0
    %140 = vmatpush1.bf16.msra.mxu0 0
    %141 = vmatprep.subr.bf16.mxu0 0
    %142 = vmatpush1.bf16.msra.mxu0 0
    %143 = vmatprep.subr.bf16.mxu0 0
    %144 = vmatpush1.bf16.msra.mxu0 0
    %145 = vmatprep.subr.bf16.mxu0 0
    %146 = vmatpush1.bf16.msra.mxu0 0
    %147 = vmatprep.subr.bf16.mxu0 0
    %148 = vmatpush1.bf16.msra.mxu0 0
    %149 = vmatprep.subr.bf16.mxu0 0
    %150 = vmatpush1.bf16.msra.mxu0 0
    %151 = vmatprep.subr.bf16.mxu0 0
    %152 = vmatpush1.bf16.msra.mxu0 0
    %153 = vmatprep.mubr.bf16.mxu0 0
    %154 = vmatmul.mubr.bf16.gmra.mrb[0].mxu0 %v54
    %v155 = vpop.f32.mrb[0].mxu0
    %v156 = vadd.f32 0.0, %v155
    %v157 = vpop.f32.mrb[0].mxu0
    %v158 = vpop.f32.mrb[0].mxu0
    %v159 = vadd.f32 0.0, %v158
    %v160 = vpop.f32.mrb[0].mxu0
    %161 = vdwg.mxu0
    %v162 = vadd.f32 %v55, %v156
    %v163 = vadd.f32 %v56, %v159
    %164 = vst [vmem:[#allocation2] sm:$0xff] %v162
    %165 = vst [vmem:[#allocation2 + $0x8] sm:$0xff] %v163
    // Predicated region
    $region26: #{tpu_custom_call.1} parent=1 // pred_check
      %p166 = pneg %p44
    $region27: #{tpu_custom_call.1} parent=1 // pred_check_branch
      %168 = sbr.rel (%p166) target = $region29
    $region28: #{tpu_custom_call.1} parent=1 // pred_region
      %v169 = vld [vmem:[#allocation2] sm:$0xff]
      %v170 = vld [vmem:[#allocation2 + $0x8] sm:$0xff]
      %v171 = vld [vmem:[%s2] sm:$0x1]
      %v173 = vlaneseq
      %v174 = vshrl.u32 %v173, 7
      %v175 = vsub.s32 0, %v174
      %v176 = vrot.slane %v171, %v175
      %v178 = vadd.f32 %v169, %v176
      %v179 = vadd.f32 %v170, %v176
      %180 = vst [vmem:[#allocation8] sm:$0xff] %v178
      %181 = vst [vmem:[#allocation8 + $0x8] sm:$0xff] %v179
    $region29: #{tpu_custom_call.1} parent=1 // pred_fallthru
      _
    // Predicated region
    $region30: #{tpu_custom_call.1} parent=1 // pred_check
      _
    $region31: #{tpu_custom_call.1} parent=1 // pred_check_branch
      %183 = sbr.rel (0) target = $region33
    $region32: #{tpu_custom_call.1} parent=1 // pred_region
      %s185 = ssub.s32 256, 256
      %186 = vsyncadd [#allocation5], %s185
      %s187 = sshll.u32 [#allocation8], 4
      %s188 = int_to_ptr.vmem [resolvable:$true] %s187
      %193 = dma.vmem_to_hbm [thread:$0]  %s188, 256, %s3, [#allocation5], 128, 128, 8
    $region33: #{tpu_custom_call.1} parent=1 // pred_fallthru
      _
    // Predicated region
    $region34: #{tpu_custom_call.1} parent=1 // pred_check
      _
    $region35: #{tpu_custom_call.1} parent=1 // pred_check_branch
      %195 = sbr.rel (0) target = $region37
    $region36: #{tpu_custom_call.1} parent=1 // pred_region
      %196 = dma.done [#allocation5], 256
    $region37: #{tpu_custom_call.1} parent=1 // pred_fallthru
      _
    %197 = vsyncpa [#allocation4], 1
    %198 = vsyncpa [#allocation7], 1
    %199 = vsyncpa [#allocation5], 1

</llo_original>
